<compile_context>
chip_gen: v7x
topology: tpu7x:2x2x1
jax: 0.10.0
libtpu: 0.0.40
codegen_flags: <defaults>
</compile_context>

<pallas_src>
import functools
import math
import re

import jax
import jax.numpy as jnp
from jax.experimental import pallas as pl
from jax.experimental.pallas import tpu as pltpu


# ----------------------------------------------------------------------------
# hardware-aware knobs
# ----------------------------------------------------------------------------
def _tpu_generation():
    try:
        kind = jax.devices()[0].device_kind.lower()
    except Exception:
        return 6
    m = re.search(r"(\d+)", kind)
    return int(m.group(1)) if m else 6


_GEN = _tpu_generation()
# v7x has 64 MiB VMEM per TensorCore; earlier generations have 128 MiB.
_VMEM_LIMIT = (48 << 20) if _GEN >= 7 else (96 << 20)
_TM_CAP = 512 if _GEN <= 5 else 1024


def _pick_tm(m, cap):
    """Row tile for matmul-style kernels: as large as possible (<= cap)."""
    if m <= cap:
        return m
    tm = cap
    while tm >= 8:
        if m % tm == 0:
            return tm
        tm //= 2
    return m


def _pick_th(h, w, cin_max):
    """Row tile (image rows) for the conv kernel: cap the in-kernel im2col
    patch (~2 MiB) and the row count (<= 4096)."""
    cap = max(256, min(4096, (2 << 20) // max(1, 9 * cin_max * 2)))
    th = h
    while th > 1 and th % 2 == 0 and th * w > cap:
        th //= 2
    if (th * w) % 8 != 0 or h % th != 0:
        th = h
    return th


def _pick_rows(h, w, cap=2048):
    th = h
    while th > 1 and th % 2 == 0 and th * w > cap:
        th //= 2
    if h % th != 0:
        th = h
    return th


# ----------------------------------------------------------------------------
# Pallas kernels
# ----------------------------------------------------------------------------
def _matmul_kernel(x_ref, w_ref, b_ref, o_ref, *, act):
    """o = act(x @ w + b), f32 accumulation, bf16 (or f32) output."""
    r = jnp.dot(x_ref[...], w_ref[...], preferred_element_type=jnp.float32)
    r = r + b_ref[...]
    if act == "relu":
        r = jnp.maximum(r, 0.0)
    elif act == "gelu":
        # tanh-approximation GELU on the f32 accumulator (EUP slot).
        c = math.sqrt(2.0 / math.pi)
        r = 0.5 * r * (1.0 + jnp.tanh(c * (r + 0.044715 * r * r * r)))
    o_ref[...] = r.astype(o_ref.dtype)


@functools.partial(jax.jit, static_argnames=("act", "out_dtype"))
def matmul(x, w, b, act="none", out_dtype=jnp.bfloat16):
    """x: (M, K), w: (K, N), b: (N,) -> (M, N)."""
    M, K = x.shape
    N = w.shape[1]
    tm = _pick_tm(M, _TM_CAP)
    assert M % tm == 0, (M, tm)
    kern = functools.partial(_matmul_kernel, act=act)
    return pl.pallas_call(
        kern,
        out_shape=jax.ShapeDtypeStruct((M, N), out_dtype),
        grid_spec=pltpu.PrefetchScalarGridSpec(
            num_scalar_prefetch=0,
            grid=(M // tm,),
            in_specs=[
                pl.BlockSpec((tm, K), lambda i: (i, 0)),
                pl.BlockSpec((K, N), lambda i: (0, 0)),   # resident weights
                pl.BlockSpec((1, N), lambda i: (0, 0)),
            ],
            out_specs=pl.BlockSpec((tm, N), lambda i: (i, 0)),
        ),
        compiler_params=pltpu.CompilerParams(
            dimension_semantics=("parallel",),
            vmem_limit_bytes=_VMEM_LIMIT),
    )(x.astype(jnp.bfloat16), w.astype(jnp.bfloat16),
      b.reshape(1, N).astype(jnp.float32))


def _ln_res_kernel(x_ref, r_ref, g_ref, b_ref, o_ref):
    """o = LayerNorm(x + r) -- fused residual + LN (post-norm, eps=1e-5)."""
    x = x_ref[...].astype(jnp.float32) + r_ref[...].astype(jnp.float32)
    mu = jnp.mean(x, axis=-1, keepdims=True)
    var = jnp.mean((x - mu) ** 2, axis=-1, keepdims=True)
    y = (x - mu) * jax.lax.rsqrt(var + 1e-5) * g_ref[...] + b_ref[...]
    o_ref[...] = y.astype(o_ref.dtype)


@jax.jit
def ln_res(x, r, gamma, beta):
    M, D = x.shape
    tm = _pick_tm(M, _TM_CAP)
    assert M % tm == 0, (M, tm)
    return pl.pallas_call(
        _ln_res_kernel,
        out_shape=jax.ShapeDtypeStruct((M, D), jnp.bfloat16),
        grid_spec=pltpu.PrefetchScalarGridSpec(
            num_scalar_prefetch=0,
            grid=(M // tm,),
            in_specs=[
                pl.BlockSpec((tm, D), lambda i: (i, 0)),
                pl.BlockSpec((tm, D), lambda i: (i, 0)),
                pl.BlockSpec((1, D), lambda i: (0, 0)),
                pl.BlockSpec((1, D), lambda i: (0, 0)),
            ],
            out_specs=pl.BlockSpec((tm, D), lambda i: (i, 0)),
        ),
        compiler_params=pltpu.CompilerParams(
            dimension_semantics=("parallel",),
            vmem_limit_bytes=_VMEM_LIMIT),
    )(x, r, gamma.reshape(1, D).astype(jnp.float32),
      beta.reshape(1, D).astype(jnp.float32))


def _attn_kernel(qkv_ref, o_ref, *, num_heads, d_model, scale):
    """All heads of one batch element in a single grid step.

    qkv_ref block: (1, S, 3*D) packed as [Q | K | V] along the last axis.
    Each head's context is written in place into o_ref (no concat).
    """
    x = qkv_ref[0]                       # (S, 3D) bf16
    dh = d_model // num_heads
    for h in range(num_heads):
        q = x[:, h * dh:(h + 1) * dh].astype(jnp.float32)
        k = x[:, d_model + h * dh: d_model + (h + 1) * dh].astype(jnp.float32)
        v = x[:, 2 * d_model + h * dh: 2 * d_model + (h + 1) * dh]
        # contract last dims -- no explicit k.T relayout
        s = jax.lax.dot_general(q, k, (((1,), (1,)), ((), ())),
                                preferred_element_type=jnp.float32) * scale
        s = s - jnp.max(s, axis=-1, keepdims=True)
        p = jnp.exp(s)
        p = p * pl.reciprocal(jnp.sum(p, axis=-1, keepdims=True), approx=True)
        ctx = jnp.dot(p.astype(v.dtype), v, preferred_element_type=jnp.float32)
        o_ref[0, :, h * dh:(h + 1) * dh] = ctx.astype(o_ref.dtype)


@functools.partial(jax.jit, static_argnames=("num_heads",))
def mha(qkv, num_heads):
    """qkv: (B, S, 3*D) -> (B, S, D)."""
    B, S, threeD = qkv.shape
    D = threeD // 3
    scale = 1.0 / math.sqrt(D // num_heads)
    kern = functools.partial(_attn_kernel, num_heads=num_heads,
                             d_model=D, scale=scale)
    return pl.pallas_call(
        kern,
        out_shape=jax.ShapeDtypeStruct((B, S, D), jnp.bfloat16),
        grid_spec=pltpu.PrefetchScalarGridSpec(
            num_scalar_prefetch=0,
            grid=(B,),
            in_specs=[pl.BlockSpec((1, S, threeD), lambda b: (b, 0, 0))],
            out_specs=pl.BlockSpec((1, S, D), lambda b: (b, 0, 0)),
        ),
        compiler_params=pltpu.CompilerParams(
            dimension_semantics=("parallel",),
            vmem_limit_bytes=_VMEM_LIMIT),
    )(qkv.astype(jnp.bfloat16))


def _conv3x3_kernel(*args, n_in, th, W, fuse_proj):
    """Fused 3x3 conv (+ folded BN + ReLU [+ final 1x1 conv]) on a row tile.

    args = x_cur[n_in] (1,th,W,Cin), x_top[n_in] (1,1,W,Cin),
           x_bot[n_in] (1,1,W,Cin), w[n_in] (9*Cin,Cout), b (1,Cout),
           [proj_w (Cout,Ncls), proj_b (1,Ncls)], o_ref.
    The halo rows are zeroed at the image border; the 9 taps are folded into
    the contraction dim (one MXU dot per input map), accumulated in a value.
    """
    x_cur = args[0:n_in]
    x_top = args[n_in:2 * n_in]
    x_bot = args[2 * n_in:3 * n_in]
    w_refs = args[3 * n_in:4 * n_in]
    b_ref = args[4 * n_in]
    nfix = 4 * n_in + 1
    if fuse_proj:
        pw_ref, pb_ref, o_ref = args[nfix], args[nfix + 1], args[nfix + 2]
    else:
        o_ref = args[nfix]

    i = pl.program_id(1)
    last = pl.num_programs(1) - 1

    acc = None
    for k in range(n_in):
        cin = x_cur[k].shape[-1]
        cur = x_cur[k][0]                                  # (th, W, cin)
        top = x_top[k][0]                                  # (1, W, cin)
        bot = x_bot[k][0]                                  # (1, W, cin)
        top = jnp.where(i == 0, jnp.zeros_like(top), top)
        bot = jnp.where(i == last, jnp.zeros_like(bot), bot)
        band = jnp.concatenate([top, cur, bot], axis=0)    # (th+2, W, cin)
        zc = jnp.zeros((th + 2, 1, cin), band.dtype)
        band = jnp.concatenate([zc, band, zc], axis=1)     # (th+2, W+2, cin)

        wk = w_refs[k][...]                                # (9*cin, Cout)
        if cin >= 8:
            # im2col in VMEM: one K-folded dot (K = 9*cin)
            cols = [band[dy:dy + th, dx:dx + W, :].reshape(th * W, cin)
                    for dy in range(3) for dx in range(3)]
            patch = jnp.concatenate(cols, axis=-1)         # (th*W, 9*cin)
            d = jnp.dot(patch, wk, preferred_element_type=jnp.float32)
            acc = d if acc is None else acc + d
        else:
            # tiny-Cin stem: per-tap dots, accumulated in a value (no ref RMW)
            wk3 = wk.reshape(9, cin, wk.shape[-1])
            for t in range(9):
                dy, dx = divmod(t, 3)
                p = band[dy:dy + th, dx:dx + W, :].reshape(th * W, cin)
                d = jnp.dot(p, wk3[t], preferred_element_type=jnp.float32)
                acc = d if acc is None else acc + d

    r = jnp.maximum(acc + b_ref[...], 0.0)                 # bias + ReLU
    if fuse_proj:
        r = jnp.dot(r.astype(jnp.bfloat16), pw_ref[...],
                    preferred_element_type=jnp.float32) + pb_ref[...]
    o_ref[0] = r.astype(o_ref.dtype)


@jax.jit
def conv3x3_bn_relu(xs, w, b, gamma, beta, proj_w=None, proj_b=None):
    """xs: tuple of NHWC maps (concat fused), w: (3,3,sum(Cin),Cout).

    If proj_w/proj_b are given, a final 1x1 conv is fused as an epilogue and
    the returned map has proj_w.shape[-1] channels (f32)."""
    B, H, W, _ = xs[0].shape
    Cout = w.shape[-1]

    # eval-mode BN fold: running_mean = 0, running_var = 1
    scale = gamma / math.sqrt(1.0 + 1e-5)
    w_f = w * scale[None, None, None, :]
    b_f = (b * scale + beta).astype(jnp.float32).reshape(1, Cout)

    cins = tuple(int(x.shape[-1]) for x in xs)
    n_in = len(xs)
    w_parts = []
    off = 0
    for cin in cins:
        w_parts.append(
            w_f[:, :, off:off + cin, :].reshape(9 * cin, Cout).astype(jnp.bfloat16))
        off += cin
    xs16 = [x.astype(jnp.bfloat16) for x in xs]

    th = _pick_th(H, W, max(cins))
    assert H % th == 0, (H, th)

    fuse_proj = proj_w is not None
    n_out = int(proj_w.shape[-1]) if fuse_proj else Cout
    out_dtype = jnp.float32 if fuse_proj else jnp.bfloat16

    kern = functools.partial(_conv3x3_kernel, n_in=n_in, th=th, W=W,
                             fuse_proj=fuse_proj)

    in_specs = []
    for cin in cins:                                     # current row tile
        in_specs.append(pl.BlockSpec((1, th, W, cin),
                                     lambda bb, ii: (bb, ii, 0, 0)))
    for cin in cins:                                     # top halo row
        in_specs.append(pl.BlockSpec(
            (1, 1, W, cin),
            lambda bb, ii: (bb, jnp.maximum(ii * th - 1, 0), 0, 0)))
    for cin in cins:                                     # bottom halo row
        in_specs.append(pl.BlockSpec(
            (1, 1, W, cin),
            lambda bb, ii: (bb, jnp.minimum(ii * th + th, H - 1), 0, 0)))
    for cin in cins:                                     # resident weights
        in_specs.append(pl.BlockSpec((9 * cin, Cout), lambda bb, ii: (0, 0)))
    in_specs.append(pl.BlockSpec((1, Cout), lambda bb, ii: (0, 0)))

    operands = [*xs16, *xs16, *xs16, *w_parts, b_f]
    if fuse_proj:
        in_specs.append(pl.BlockSpec((Cout, n_out), lambda bb, ii: (0, 0)))
        in_specs.append(pl.BlockSpec((1, n_out), lambda bb, ii: (0, 0)))
        operands += [proj_w.astype(jnp.bfloat16),
                     proj_b.astype(jnp.float32).reshape(1, n_out)]

    out = pl.pallas_call(
        kern,
        out_shape=jax.ShapeDtypeStruct((B, H * W, n_out), out_dtype),
        grid_spec=pltpu.PrefetchScalarGridSpec(
            num_scalar_prefetch=0,
            grid=(B, H // th),
            in_specs=in_specs,
            out_specs=pl.BlockSpec((1, th * W, n_out),
                                   lambda bb, ii: (bb, ii, 0)),
        ),
        compiler_params=pltpu.CompilerParams(
            dimension_semantics=("parallel", "parallel"),
            vmem_limit_bytes=_VMEM_LIMIT),
    )(*operands)
    return out.reshape(B, H, W, n_out)


def _deconv_kernel(x_ref, w_ref, b_ref, o_ref):
    """ConvTranspose2d(k=2, s=2) row tile for one dy sub-row.

    x_ref: (1, th, W, Cin); w_ref: (1, Cin, 2*Cout) ordered (dx, co);
    o_ref: (1, th, 1, W, 2*Cout) sub-block of the (B, H, 2, W, 2*Cout) output,
    whose row-major layout IS the pixel-shuffled (B, 2H, 2W, Cout) map.
    """
    _, th, W, cin = x_ref.shape
    n2 = o_ref.shape[-1]
    x = x_ref[0].reshape(th * W, cin)
    y = jnp.dot(x, w_ref[0], preferred_element_type=jnp.float32) + b_ref[...]
    o_ref[...] = y.reshape(1, th, 1, W, n2).astype(o_ref.dtype)


@jax.jit
def deconv2x2(x, w, b):
    """ConvTranspose2d(k=2, s=2). x: (B,H,W,Cin), w: (Cin,Cout,2,2)."""
    B, H, W, Cin = x.shape
    Cout = w.shape[1]
    # (ci, co, dy, dx) -> (dy, ci, dx*Cout): the pixel shuffle becomes a free
    # row-major reinterpretation of the kernel's output layout.
    w2 = jnp.transpose(w, (2, 0, 3, 1)).reshape(2, Cin, 2 * Cout)
    b2 = jnp.tile(b, 2).reshape(1, 2 * Cout).astype(jnp.float32)
    th = _pick_rows(H, W)
    out = pl.pallas_call(
        _deconv_kernel,
        out_shape=jax.ShapeDtypeStruct((B, H, 2, W, 2 * Cout), jnp.bfloat16),
        grid_spec=pltpu.PrefetchScalarGridSpec(
            num_scalar_prefetch=0,
            grid=(B, H // th, 2),
            in_specs=[
                pl.BlockSpec((1, th, W, Cin), lambda bb, ii, dy: (bb, ii, 0, 0)),
                pl.BlockSpec((1, Cin, 2 * Cout), lambda bb, ii, dy: (dy, 0, 0)),
                pl.BlockSpec((1, 2 * Cout), lambda bb, ii, dy: (0, 0)),
            ],
            out_specs=pl.BlockSpec((1, th, 1, W, 2 * Cout),
                                   lambda bb, ii, dy: (bb, ii, dy, 0, 0)),
        ),
        compiler_params=pltpu.CompilerParams(
            dimension_semantics=("parallel", "parallel", "arbitrary"),
            vmem_limit_bytes=_VMEM_LIMIT),
    )(x.astype(jnp.bfloat16), w2.astype(jnp.bfloat16), b2)
    return out.reshape(B, 2 * H, 2 * W, Cout)      # free reshape


# ----------------------------------------------------------------------------
# layer wrappers
# ----------------------------------------------------------------------------
def conv_block(xs, p, proj=None):
    if proj is None:
        return conv3x3_bn_relu(tuple(xs), p["w"], p["b"], p["gamma"], p["beta"])
    return conv3x3_bn_relu(tuple(xs), p["w"], p["b"], p["gamma"], p["beta"],
                           proj[0], proj[1])


def transformer_layer(x2, p, B, S, D, num_heads):
    """nn.TransformerEncoderLayer (batch_first, post-norm, eval mode)."""
    qkv = matmul(x2, p["wqkv"], p["bqkv"])               # fused QKV (M, 3D)
    attn = mha(qkv.reshape(B, S, 3 * D), num_heads=num_heads)
    o = matmul(attn.reshape(B * S, D), p["wo"], p["bo"])
    x2 = ln_res(x2, o, p["ln1_g"], p["ln1_b"])           # fused residual + LN
    h = matmul(x2, p["w1"], p["b1"], act="gelu")         # fused GELU epilogue
    h = matmul(h, p["w2"], p["b2"])
    x2 = ln_res(x2, h, p["ln2_g"], p["ln2_b"])
    return x2


# ----------------------------------------------------------------------------
# parameters (deterministic synthetic init)
# ----------------------------------------------------------------------------
class ParamGen:
    def __init__(self, key):
        self.key = key

    def normal(self, shape, std):
        self.key, sub = jax.random.split(self.key)
        return jax.random.normal(sub, shape, jnp.float32) * std

    def zeros(self, shape):
        return jnp.zeros(shape, jnp.float32)

    def ones(self, shape):
        return jnp.ones(shape, jnp.float32)


def make_conv_params(g, cin, cout):
    return {"w": g.normal((3, 3, cin, cout), 1.0 / math.sqrt(9 * cin)),
            "b": g.zeros((cout,)),
            "gamma": g.ones((cout,)),
            "beta": g.zeros((cout,))}


def make_deconv_params(g, cin, cout):
    return {"w": g.normal((cin, cout, 2, 2), 1.0 / math.sqrt(cin)),
            "b": g.zeros((cout,))}


def make_encoder_layer_params(g, d, mlp):
    s = 1.0 / math.sqrt(d)
    return {"wqkv": g.normal((d, 3 * d), s), "bqkv": g.zeros((3 * d,)),
            "wo": g.normal((d, d), s), "bo": g.zeros((d,)),
            "ln1_g": g.ones((d,)), "ln1_b": g.zeros((d,)),
            "w1": g.normal((d, mlp), s), "b1": g.zeros((mlp,)),
            "w2": g.normal((mlp, d), 1.0 / math.sqrt(mlp)),
            "b2": g.zeros((d,)),
            "ln2_g": g.ones((d,)), "ln2_b": g.zeros((d,))}


def build_params(g, cfg):
    hd = cfg["hidden_dim"]
    patch_dim = cfg["patch_size"] ** 2 * cfg["num_channels"]
    return {
        "patch_w": g.normal((patch_dim, hd), 1.0 / math.sqrt(patch_dim)),
        "patch_b": g.zeros((hd,)),
        "positions": g.normal((cfg["num_patches"], hd), 0.02),
        "layers": [make_encoder_layer_params(g, hd, cfg["mlp_dim"])
                   for _ in range(cfg["num_layers"])],
        # decoder
        "d1": make_deconv_params(g, hd, 512),
        "s1_d": make_deconv_params(g, hd, 512),
        "s1_c": make_conv_params(g, 512, 512),
        "c1_a": make_conv_params(g, 1024, 512),
        "c1_b": make_conv_params(g, 512, 512),
        "d2": make_deconv_params(g, 512, 256),
        "s2_d1": make_deconv_params(g, hd, 256),
        "s2_c1": make_conv_params(g, 256, 256),
        "s2_d2": make_deconv_params(g, 256, 256),
        "s2_c2": make_conv_params(g, 256, 256),
        "c2_a": make_conv_params(g, 512, 256),
        "c2_b": make_conv_params(g, 256, 256),
        "d3": make_deconv_params(g, 256, 128),
        "s3_d1": make_deconv_params(g, hd, 128),
        "s3_c1": make_conv_params(g, 128, 128),
        "s3_d2": make_deconv_params(g, 128, 128),
        "s3_c2": make_conv_params(g, 128, 128),
        "s3_d3": make_deconv_params(g, 128, 128),
        "s3_c3": make_conv_params(g, 128, 128),
        "c3_a": make_conv_params(g, 256, 128),
        "c3_b": make_conv_params(g, 128, 128),
        "d4": make_deconv_params(g, 128, 64),
        "s4_c1": make_conv_params(g, cfg["num_channels"], 64),
        "s4_c2": make_conv_params(g, 64, 64),
        "c4_a": make_conv_params(g, 128, 64),
        "c4_b": make_conv_params(g, 64, 64),
        "out_w": g.normal((64, cfg["num_classes"]), 1.0 / 8.0),
        "out_b": g.zeros((cfg["num_classes"],)),
    }


# ----------------------------------------------------------------------------
# full forward pass
# ----------------------------------------------------------------------------
def unetr2d_forward(params, inputs_nchw, cfg):
    B, C, Himg, Wimg = inputs_nchw.shape
    P = cfg["patch_size"]
    G = Himg // P                         # patch grid per side
    D = cfg["hidden_dim"]
    nh = cfg["num_heads"]
    S = G * G

    x_nhwc = jnp.transpose(inputs_nchw, (0, 2, 3, 1)).astype(jnp.bfloat16)

    # --- patch + position embeddings (Conv2d k=P, s=P == per-patch linear) ---
    patches = x_nhwc.reshape(B, G, P, G, P, C)
    patches = patches.transpose(0, 1, 3, 2, 4, 5).reshape(B * S, P * P * C)
    x2 = matmul(patches, params["patch_w"], params["patch_b"])      # (B*S, D)
    x2 = (x2.reshape(B, S, D)
          + params["positions"][None].astype(jnp.bfloat16)).astype(jnp.bfloat16)
    x2 = x2.reshape(B * S, D)

    # --- transformer encoder (12 layers, skips at 3/6/9/12) ---
    skips = []
    for i, lp in enumerate(params["layers"]):
        x2 = transformer_layer(x2, lp, B, S, D, nh)
        if (i + 1) in (3, 6, 9, 12):
            skips.append(x2)
    z3, z6, z9, z12 = skips

    def seq_to_img(z):
        # matches z.permute(0,2,1).view(B, hidden, grid, grid) (NHWC here)
        return z.reshape(B, G, G, D)

    z0 = x_nhwc
    z3, z6, z9, z12 = map(seq_to_img, (z3, z6, z9, z12))
    p = params

    # --- CNN decoder (concat -> conv is fused inside the conv kernel) ---
    x = deconv2x2(z12, p["d1"]["w"], p["d1"]["b"])
    s = deconv2x2(z9, p["s1_d"]["w"], p["s1_d"]["b"])
    s = conv_block((s,), p["s1_c"])
    x = conv_block((x, s), p["c1_a"])
    x = conv_block((x,), p["c1_b"])

    x = deconv2x2(x, p["d2"]["w"], p["d2"]["b"])
    s = deconv2x2(z6, p["s2_d1"]["w"], p["s2_d1"]["b"])
    s = conv_block((s,), p["s2_c1"])
    s = deconv2x2(s, p["s2_d2"]["w"], p["s2_d2"]["b"])
    s = conv_block((s,), p["s2_c2"])
    x = conv_block((x, s), p["c2_a"])
    x = conv_block((x,), p["c2_b"])

    x = deconv2x2(x, p["d3"]["w"], p["d3"]["b"])
    s = deconv2x2(z3, p["s3_d1"]["w"], p["s3_d1"]["b"])
    s = conv_block((s,), p["s3_c1"])
    s = deconv2x2(s, p["s3_d2"]["w"], p["s3_d2"]["b"])
    s = conv_block((s,), p["s3_c2"])
    s = deconv2x2(s, p["s3_d3"]["w"], p["s3_d3"]["b"])
    s = conv_block((s,), p["s3_c3"])
    x = conv_block((x, s), p["c3_a"])
    x = conv_block((x,), p["c3_b"])

    x = deconv2x2(x, p["d4"]["w"], p["d4"]["b"])
    s = conv_block((z0,), p["s4_c1"])
    s = conv_block((s,), p["s4_c2"])
    x = conv_block((x, s), p["c4_a"])
    # last ConvBlock with the final 1x1 output conv fused as its epilogue
    logits = conv_block((x,), p["c4_b"], proj=(p["out_w"], p["out_b"]))
    return jnp.transpose(logits, (0, 3, 1, 2))    # (B, num_classes, H, W)


# ----------------------------------------------------------------------------
if __name__ == "__main__":
    # The reference module hard-codes a 4-stage (16x) decoder, which forces
    # patch_size = 16; the canonical config is image_size = 256.  For a fast,
    # deterministic smoke test we run the exact same graph at a reduced patch
    # grid (image_size = 64 -> 4x4 patches) with small hidden/mlp dims; the
    # decoder channel widths (512/256/128/64) and the 12 encoder layers match
    # the reference.
    cfg = dict(image_size=64, patch_size=16, num_channels=3,
               hidden_dim=64, mlp_dim=128, num_heads=4, num_layers=12,
               num_classes=2)
    cfg["num_patches"] = (cfg["image_size"] // cfg["patch_size"]) ** 2

    root = jax.random.PRNGKey(0)
    inp_key, param_key = jax.random.split(root)

    B = 2
    x = jax.random.normal(
        inp_key,
        (B, cfg["num_channels"], cfg["image_size"], cfg["image_size"]),
        jnp.float32)

    params = build_params(ParamGen(param_key), cfg)

    out = unetr2d_forward(params, x, cfg)
    out = jax.block_until_ready(out)

    assert out.shape == (B, cfg["num_classes"], cfg["image_size"],
                         cfg["image_size"]), out.shape
    assert bool(jnp.isfinite(out).all())
    print("KERNEL_OK")
</pallas_src>

<mosaic_0001>
module attributes {stable_mosaic.version = 11 : i64} {
  func.func @_matmul_kernel(%arg0: i32, %arg1: memref<32x768xbf16, #tpu.memory_space<vmem>>, %arg2: memref<768x64xbf16, #tpu.memory_space<vmem>>, %arg3: memref<1x64xf32, #tpu.memory_space<vmem>>, %arg4: memref<32x64xbf16, #tpu.memory_space<vmem>>) attributes {dimension_semantics = [#tpu.dimension_semantics<parallel>], iteration_bounds = array<i64: 1>, scalar_prefetch = 0 : i64, scratch_operands = 0 : i64, tpu.core_type = #tpu.core_type<tc>, window_params = [{transform_indices = @transform_0, window_bounds = array<i64: 32, 768>}, {pipeline_mode = #tpu.pipeline_mode<synchronous>, transform_indices = @transform_1, window_bounds = array<i64: 768, 64>}, {pipeline_mode = #tpu.pipeline_mode<synchronous>, transform_indices = @transform_2, window_bounds = array<i64: 1, 64>}, {transform_indices = @transform_3, window_bounds = array<i64: 32, 64>}]} {
    %c0 = arith.constant 0 : index
    %c0_0 = arith.constant 0 : index
    %0 = vector.load %arg1[%c0, %c0_0] : memref<32x768xbf16, #tpu.memory_space<vmem>>, vector<32x768xbf16>
    %c0_1 = arith.constant 0 : index
    %c0_2 = arith.constant 0 : index
    %1 = vector.load %arg2[%c0_1, %c0_2] : memref<768x64xbf16, #tpu.memory_space<vmem>>, vector<768x64xbf16>
    %cst = arith.constant dense<0.000000e+00> : vector<32x64xf32>
    %2 = tpu.matmul %0, %1, %cst {dimension_numbers = #tpu.dot_dimension_numbers<[1], [0], [0], [1], [0, 0, 1, 1], [], []>} : vector<32x768xbf16>, vector<768x64xbf16>, vector<32x64xf32> -> vector<32x64xf32>
    %c0_3 = arith.constant 0 : index
    %c0_4 = arith.constant 0 : index
    %3 = vector.load %arg3[%c0_3, %c0_4] : memref<1x64xf32, #tpu.memory_space<vmem>>, vector<1x64xf32>
    %4 = vector.broadcast %3 : vector<1x64xf32> to vector<32x64xf32>
    %5 = arith.addf %2, %4 : vector<32x64xf32>
    %6 = arith.truncf %5 : vector<32x64xf32> to vector<32x64xbf16>
    %c0_5 = arith.constant 0 : index
    %c0_6 = arith.constant 0 : index
    %7 = vector.load %arg4[%c0_5, %c0_6] : memref<32x64xbf16, #tpu.memory_space<vmem>>, vector<32x64xbf16>
    tpu.vector_store %arg4[%c0_5, %c0_6], %6 {strides = array<i32>} : memref<32x64xbf16, #tpu.memory_space<vmem>>, vector<32x64xbf16>,
    return
  }
  func.func @transform_0(%arg0: i32) -> (i32, i32) {
    %c0_i32 = arith.constant 0 : i32
    %c0_i32_0 = arith.constant 0 : i32
    return %arg0, %c0_i32 : i32, i32
  }
  func.func @transform_1(%arg0: i32) -> (i32, i32) {
    %c0_i32 = arith.constant 0 : i32
    %c0_i32_0 = arith.constant 0 : i32
    %c0_i32_1 = arith.constant 0 : i32
    return %c0_i32, %c0_i32_0 : i32, i32
  }
  func.func @transform_2(%arg0: i32) -> (i32, i32) {
    %c0_i32 = arith.constant 0 : i32
    %c0_i32_0 = arith.constant 0 : i32
    %c0_i32_1 = arith.constant 0 : i32
    return %c0_i32, %c0_i32_0 : i32, i32
  }
  func.func @transform_3(%arg0: i32) -> (i32, i32) {
    %c0_i32 = arith.constant 0 : i32
    %c0_i32_0 = arith.constant 0 : i32
    return %arg0, %c0_i32 : i32, i32
  }
}

</mosaic_0001>

<llo_original>
// kernel: matmul.1
$region0: #{matmul.1}
  #allocation0 [shape = 'u32[]', space=smem, size = 0x4, offset = 0x4, fixed_abs, tag = 'smem constant byte address 0x4 - core index']
  #allocation1 [shape = 'u32[144,128]{1,0:T(1,128)}', space=vmem, size = 0x12000, scoped, tag = 'internal scratch']
  %s0 = inlined_call_operand.hbm [shape: bf16[32,768], index: 0, kind: input, shape index: {}]
  %s1 = inlined_call_operand.hbm [shape: bf16[768,64], index: 1, kind: input, shape index: {}]
  %s2 = inlined_call_operand.hbm [shape: f32[1,64], index: 2, kind: input, shape index: {}]
  %s3 = inlined_call_operand.hbm [shape: bf16[32,64], index: 3, kind: output, shape index: {}]
  %s4 = sld [smem:[#allocation0]]
  $region34: #{matmul.1} parent=0
    _
  %s6 = ssub.s32 1, %s4
  %s7 = scalar_select 0, %s6, %s4
  $region1: #{matmul.1} parent=0
    #allocation2 [shape = 'u8[49152]{0}', space=vmem, size = 0xc000, scoped, tag = 'input window, operand 0, single buffered']
    #allocation3 [shape = 's32[1]{0}', space=sflag, size = 0x4, scoped, tag = 'scoped memory for matmul.1']
    #allocation4 [shape = 's32[1]{0}', space=sflag, size = 0x4, scoped, tag = 'scoped memory for matmul.1']
    #allocation5 [shape = 'u8[196608]{0}', space=vmem, size = 0x30000, scoped, tag = 'input window, operand 1, single buffered']
    #allocation6 [shape = 's32[1]{0}', space=sflag, size = 0x4, scoped, tag = 'scoped memory for matmul.1']
    #allocation7 [shape = 'u8[512]{0}', space=vmem, size = 0x400, scoped, tag = 'input window, operand 2, single buffered']
    #allocation8 [shape = 'u8[8192]{0}', space=vmem, size = 0x2000, scoped, tag = 'output window, operand 0, single buffered']
    %8 = vsyncpa [#allocation3], 0
    %9 = vsyncpa [#allocation6], 0
    %10 = vsyncpa [#allocation4], 0
    // Predicated region
    $region2: #{matmul.1} parent=1 // pred_check
      _
    $region3: #{matmul.1} parent=1 // pred_check_branch
      %12 = sbr.rel (0) target = $region5
    $region4: #{matmul.1} parent=1 // pred_region
      %s14 = ssub.s32 1536, 1536
      %15 = vsyncadd [#allocation3], %s14
      %s16 = sshll.u32 [#allocation2], 4
      %s17 = int_to_ptr.vmem [resolvable:$true] %s16
      %22 = dma.hbm_to_vmem [thread:$0]  %s0, 1536, %s17, [#allocation3], 384, 384, 24
    $region5: #{matmul.1} parent=1 // pred_fallthru
      _
    // Predicated region
    $region6: #{matmul.1} parent=1 // pred_check
      _
    $region7: #{matmul.1} parent=1 // pred_check_branch
      %24 = sbr.rel (0) target = $region9
    $region8: #{matmul.1} parent=1 // pred_region
      %s26 = ssub.s32 6144, 6144
      %27 = vsyncadd [#allocation6], %s26
      %s28 = sshll.u32 [#allocation5], 4
      %s29 = int_to_ptr.vmem [resolvable:$true] %s28
      %34 = dma.hbm_to_vmem [thread:$0]  %s1, 6144, %s29, [#allocation6], 64, 64, 4
    $region9: #{matmul.1} parent=1 // pred_fallthru
      _
    // Predicated region
    $region10: #{matmul.1} parent=1 // pred_check
      _
    $region11: #{matmul.1} parent=1 // pred_check_branch
      %36 = sbr.rel (0) target = $region13
    $region12: #{matmul.1} parent=1 // pred_region
      %s38 = ssub.s32 16, 16
      %39 = vsyncadd [#allocation6], %s38
      %s41 = sshll.u32 [#allocation7], 4
      %s42 = int_to_ptr.vmem [resolvable:$true] %s41
      %44 = dma.hbm_to_vmem [thread:$0]  %s2, 16, %s42, [#allocation6]
    $region13: #{matmul.1} parent=1 // pred_fallthru
      _
    // Predicated region
    $region14: #{matmul.1} parent=1 // pred_check
      _
    $region15: #{matmul.1} parent=1 // pred_check_branch
      %46 = sbr.rel (0) target = $region17
    $region16: #{matmul.1} parent=1 // pred_region
      %47 = dma.done [#allocation3], 1536
    $region17: #{matmul.1} parent=1 // pred_fallthru
      _
    // Predicated region
    $region18: #{matmul.1} parent=1 // pred_check
      _
    $region19: #{matmul.1} parent=1 // pred_check_branch
      %49 = sbr.rel (0) target = $region21
    $region20: #{matmul.1} parent=1 // pred_region
      %50 = dma.done [#allocation6], 6144
    $region21: #{matmul.1} parent=1 // pred_fallthru
      _
    // Predicated region
    $region22: #{matmul.1} parent=1 // pred_check
      _
    $region23: #{matmul.1} parent=1 // pred_check_branch
      %52 = sbr.rel (0) target = $region25
    $region24: #{matmul.1} parent=1 // pred_region
      %53 = dma.done [#allocation6], 16
    $region25: #{matmul.1} parent=1 // pred_fallthru
      _
    %v55 = vld [vmem:[#allocation2] sm:$0xff]
    %v56 = vld [vmem:[#allocation2 + $0x8] sm:$0xff]
    %v57 = vld [vmem:[#allocation2 + $0x10] sm:$0xff]
    %v58 = vld [vmem:[#allocation2 + $0x18] sm:$0xff]
    %v59 = vld [vmem:[#allocation2 + $0x20] sm:$0xff]
    %v60 = vld [vmem:[#allocation2 + $0x28] sm:$0xff]
    %v61 = vld [vmem:[#allocation2 + $0x30] sm:$0xff]
    %v62 = vld [vmem:[#allocation2 + $0x38] sm:$0xff]
    %v63 = vld [vmem:[#allocation2 + $0x40] sm:$0xff]
    %v64 = vld [vmem:[#allocation2 + $0x48] sm:$0xff]
    %v65 = vld [vmem:[#allocation2 + $0x50] sm:$0xff]
    %v66 = vld [vmem:[#allocation2 + $0x58] sm:$0xff]
    %v67 = vld [vmem:[#allocation5] sm:$0xf]
    %v68 = vld [vmem:[#allocation5 + $0x4] sm:$0xf]
    %v69 = vld [vmem:[#allocation5 + $0x8] sm:$0xf]
    %v70 = vld [vmem:[#allocation5 + $0xc] sm:$0xf]
    %v71 = vld [vmem:[#allocation5 + $0x10] sm:$0xf]
    %v72 = vld [vmem:[#allocation5 + $0x14] sm:$0xf]
    %v73 = vld [vmem:[#allocation5 + $0x18] sm:$0xf]
    %v74 = vld [vmem:[#allocation5 + $0x1c] sm:$0xf]
    %v75 = vld [vmem:[#allocation5 + $0x20] sm:$0xf]
    %v76 = vld [vmem:[#allocation5 + $0x24] sm:$0xf]
    %v77 = vld [vmem:[#allocation5 + $0x28] sm:$0xf]
    %v78 = vld [vmem:[#allocation5 + $0x2c] sm:$0xf]
    %v79 = vld [vmem:[#allocation5 + $0x30] sm:$0xf]
    %v80 = vld [vmem:[#allocation5 + $0x34] sm:$0xf]
    %v81 = vld [vmem:[#allocation5 + $0x38] sm:$0xf]
    %v82 = vld [vmem:[#allocation5 + $0x3c] sm:$0xf]
    %v83 = vld [vmem:[#allocation5 + $0x40] sm:$0xf]
    %v84 = vld [vmem:[#allocation5 + $0x44] sm:$0xf]
    %v85 = vld [vmem:[#allocation5 + $0x48] sm:$0xf]
    %v86 = vld [vmem:[#allocation5 + $0x4c] sm:$0xf]
    %v87 = vld [vmem:[#allocation5 + $0x50] sm:$0xf]
    %v88 = vld [vmem:[#allocation5 + $0x54] sm:$0xf]
    %v89 = vld [vmem:[#allocation5 + $0x58] sm:$0xf]
    %v90 = vld [vmem:[#allocation5 + $0x5c] sm:$0xf]
    %v91 = vld [vmem:[#allocation5 + $0x60] sm:$0xf]
    %v92 = vld [vmem:[#allocation5 + $0x64] sm:$0xf]
    %v93 = vld [vmem:[#allocation5 + $0x68] sm:$0xf]
    %v94 = vld [vmem:[#allocation5 + $0x6c] sm:$0xf]
    %v95 = vld [vmem:[#allocation5 + $0x70] sm:$0xf]
    %v96 = vld [vmem:[#allocation5 + $0x74] sm:$0xf]
    %v97 = vld [vmem:[#allocation5 + $0x78] sm:$0xf]
    %v98 = vld [vmem:[#allocation5 + $0x7c] sm:$0xf]
    %v99 = vld [vmem:[#allocation5 + $0x80] sm:$0xf]
    %v100 = vld [vmem:[#allocation5 + $0x84] sm:$0xf]
    %v101 = vld [vmem:[#allocation5 + $0x88] sm:$0xf]
    %v102 = vld [vmem:[#allocation5 + $0x8c] sm:$0xf]
    %v103 = vld [vmem:[#allocation5 + $0x90] sm:$0xf]
    %v104 = vld [vmem:[#allocation5 + $0x94] sm:$0xf]
    %v105 = vld [vmem:[#allocation5 + $0x98] sm:$0xf]
    %v106 = vld [vmem:[#allocation5 + $0x9c] sm:$0xf]
    %v107 = vld [vmem:[#allocation5 + $0xa0] sm:$0xf]
    %v108 = vld [vmem:[#allocation5 + $0xa4] sm:$0xf]
    %v109 = vld [vmem:[#allocation5 + $0xa8] sm:$0xf]
    %v110 = vld [vmem:[#allocation5 + $0xac] sm:$0xf]
    %v111 = vld [vmem:[#allocation5 + $0xb0] sm:$0xf]
    %v112 = vld [vmem:[#allocation5 + $0xb4] sm:$0xf]
    %v113 = vld [vmem:[#allocation5 + $0xb8] sm:$0xf]
    %v114 = vld [vmem:[#allocation5 + $0xbc] sm:$0xf]
    %v115 = vld [vmem:[#allocation5 + $0xc0] sm:$0xf]
    %v116 = vld [vmem:[#allocation5 + $0xc4] sm:$0xf]
    %v117 = vld [vmem:[#allocation5 + $0xc8] sm:$0xf]
    %v118 = vld [vmem:[#allocation5 + $0xcc] sm:$0xf]
    %v119 = vld [vmem:[#allocation5 + $0xd0] sm:$0xf]
    %v120 = vld [vmem:[#allocation5 + $0xd4] sm:$0xf]
    %v121 = vld [vmem:[#allocation5 + $0xd8] sm:$0xf]
    %v122 = vld [vmem:[#allocation5 + $0xdc] sm:$0xf]
    %v123 = vld [vmem:[#allocation5 + $0xe0] sm:$0xf]
    %v124 = vld [vmem:[#allocation5 + $0xe4] sm:$0xf]
    %v125 = vld [vmem:[#allocation5 + $0xe8] sm:$0xf]
    %v126 = vld [vmem:[#allocation5 + $0xec] sm:$0xf]
    %v127 = vld [vmem:[#allocation5 + $0xf0] sm:$0xf]
    %v128 = vld [vmem:[#allocation5 + $0xf4] sm:$0xf]
    %v129 = vld [vmem:[#allocation5 + $0xf8] sm:$0xf]
    %v130 = vld [vmem:[#allocation5 + $0xfc] sm:$0xf]
    %v131 = vld [vmem:[#allocation5 + $0x100] sm:$0xf]
    %v132 = vld [vmem:[#allocation5 + $0x104] sm:$0xf]
    %v133 = vld [vmem:[#allocation5 + $0x108] sm:$0xf]
    %v134 = vld [vmem:[#allocation5 + $0x10c] sm:$0xf]
    %v135 = vld [vmem:[#allocation5 + $0x110] sm:$0xf]
    %v136 = vld [vmem:[#allocation5 + $0x114] sm:$0xf]
    %v137 = vld [vmem:[#allocation5 + $0x118] sm:$0xf]
    %v138 = vld [vmem:[#allocation5 + $0x11c] sm:$0xf]
    %v139 = vld [vmem:[#allocation5 + $0x120] sm:$0xf]
    %v140 = vld [vmem:[#allocation5 + $0x124] sm:$0xf]
    %v141 = vld [vmem:[#allocation5 + $0x128] sm:$0xf]
    %v142 = vld [vmem:[#allocation5 + $0x12c] sm:$0xf]
    %v143 = vld [vmem:[#allocation5 + $0x130] sm:$0xf]
    %v144 = vld [vmem:[#allocation5 + $0x134] sm:$0xf]
    %v145 = vld [vmem:[#allocation5 + $0x138] sm:$0xf]
    %v146 = vld [vmem:[#allocation5 + $0x13c] sm:$0xf]
    %v147 = vld [vmem:[#allocation5 + $0x140] sm:$0xf]
    %v148 = vld [vmem:[#allocation5 + $0x144] sm:$0xf]
    %v149 = vld [vmem:[#allocation5 + $0x148] sm:$0xf]
    %v150 = vld [vmem:[#allocation5 + $0x14c] sm:$0xf]
    %v151 = vld [vmem:[#allocation5 + $0x150] sm:$0xf]
    %v152 = vld [vmem:[#allocation5 + $0x154] sm:$0xf]
    %v153 = vld [vmem:[#allocation5 + $0x158] sm:$0xf]
    %v154 = vld [vmem:[#allocation5 + $0x15c] sm:$0xf]
    %v155 = vld [vmem:[#allocation5 + $0x160] sm:$0xf]
    %v156 = vld [vmem:[#allocation5 + $0x164] sm:$0xf]
    %v157 = vld [vmem:[#allocation5 + $0x168] sm:$0xf]
    %v158 = vld [vmem:[#allocation5 + $0x16c] sm:$0xf]
    %v159 = vld [vmem:[#allocation5 + $0x170] sm:$0xf]
    %v160 = vld [vmem:[#allocation5 + $0x174] sm:$0xf]
    %v161 = vld [vmem:[#allocation5 + $0x178] sm:$0xf]
    %v162 = vld [vmem:[#allocation5 + $0x17c] sm:$0xf]
    %v163 = vld [vmem:[#allocation7] sm:$0x1]
    %v165 = vlaneseq
    %v166 = vshrl.u32 %v165, 7
    %v167 = vsub.s32 0, %v166
    %v168 = vrot.slane %v163, %v167
    %v182 = vunpack.c.l.b16 %v55
    %v183 = vunpack.c.h.b16 %v55
    %v184 = vunpack.c.l.b16 %v56
    %v185 = vunpack.c.h.b16 %v56
    %v186 = vunpack.c.l.b16 %v57
    %v187 = vunpack.c.h.b16 %v57
    %v188 = vunpack.c.l.b16 %v58
    %v189 = vunpack.c.h.b16 %v58
    %v190 = vunpack.c.l.b16 %v59
    %v191 = vunpack.c.h.b16 %v59
    %v192 = vunpack.c.l.b16 %v60
    %v193 = vunpack.c.h.b16 %v60
    %v194 = vunpack.c.l.b16 %v61
    %v195 = vunpack.c.h.b16 %v61
    %v196 = vunpack.c.l.b16 %v62
    %v197 = vunpack.c.h.b16 %v62
    %v198 = vunpack.c.l.b16 %v63
    %v199 = vunpack.c.h.b16 %v63
    %v200 = vunpack.c.l.b16 %v64
    %v201 = vunpack.c.h.b16 %v64
    %v202 = vunpack.c.l.b16 %v65
    %v203 = vunpack.c.h.b16 %v65
    %v204 = vunpack.c.l.b16 %v66
    %v205 = vunpack.c.h.b16 %v66
    %v206 = vpack.c.b16 %v188, %v182
    %v207 = vpack.c.b16 %v189, %v183
    %v208 = vpack.c.b16 %v190, %v184
    %v209 = vpack.c.b16 %v191, %v185
    %v210 = vpack.c.b16 %v192, %v186
    %v211 = vpack.c.b16 %v193, %v187
    %v212 = vpack.c.b16 %v200, %v194
    %v213 = vpack.c.b16 %v201, %v195
    %v214 = vpack.c.b16 %v202, %v196
    %v215 = vpack.c.b16 %v203, %v197
    %v216 = vpack.c.b16 %v204, %v198
    %v217 = vpack.c.b16 %v205, %v199
    %v326 = vunpack.c.l.b16 %v67
    %v327 = vunpack.c.l.b16 %v68
    %v328 = vunpack.c.l.b16 %v69
    %v329 = vunpack.c.l.b16 %v70
    %v330 = vunpack.c.l.b16 %v71
    %v331 = vunpack.c.l.b16 %v72
    %v332 = vunpack.c.l.b16 %v73
    %v333 = vunpack.c.l.b16 %v74
    %v334 = vunpack.c.l.b16 %v75
    %v335 = vunpack.c.l.b16 %v76
    %v336 = vunpack.c.l.b16 %v77
    %v337 = vunpack.c.l.b16 %v78
    %v338 = vunpack.c.l.b16 %v79
    %v339 = vunpack.c.l.b16 %v80
    %v340 = vunpack.c.l.b16 %v81
    %v341 = vunpack.c.l.b16 %v82
    %v342 = vunpack.c.l.b16 %v83
    %v343 = vunpack.c.l.b16 %v84
    %v344 = vunpack.c.l.b16 %v85
    %v345 = vunpack.c.l.b16 %v86
    %v346 = vunpack.c.l.b16 %v87
    %v347 = vunpack.c.l.b16 %v88
    %v348 = vunpack.c.l.b16 %v89
    %v349 = vunpack.c.l.b16 %v90
    %v350 = vunpack.c.l.b16 %v91
    %v351 = vunpack.c.l.b16 %v92
    %v352 = vunpack.c.l.b16 %v93
    %v353 = vunpack.c.l.b16 %v94
    %v354 = vunpack.c.l.b16 %v95
    %v355 = vunpack.c.l.b16 %v96
    %v356 = vunpack.c.l.b16 %v97
    %v357 = vunpack.c.l.b16 %v98
    %v358 = vunpack.c.l.b16 %v99
    %v359 = vunpack.c.l.b16 %v100
    %v360 = vunpack.c.l.b16 %v101
    %v361 = vunpack.c.l.b16 %v102
    %v362 = vunpack.c.l.b16 %v103
    %v363 = vunpack.c.l.b16 %v104
    %v364 = vunpack.c.l.b16 %v105
    %v365 = vunpack.c.l.b16 %v106
    %v366 = vunpack.c.l.b16 %v107
    %v367 = vunpack.c.l.b16 %v108
    %v368 = vunpack.c.l.b16 %v109
    %v369 = vunpack.c.l.b16 %v110
    %v370 = vunpack.c.l.b16 %v111
    %v371 = vunpack.c.l.b16 %v112
    %v372 = vunpack.c.l.b16 %v113
    %v373 = vunpack.c.l.b16 %v114
    %v374 = vunpack.c.l.b16 %v115
    %v375 = vunpack.c.l.b16 %v116
    %v376 = vunpack.c.l.b16 %v117
    %v377 = vunpack.c.l.b16 %v118
    %v378 = vunpack.c.l.b16 %v119
    %v379 = vunpack.c.l.b16 %v120
    %v380 = vunpack.c.l.b16 %v121
    %v381 = vunpack.c.l.b16 %v122
    %v382 = vunpack.c.l.b16 %v123
    %v383 = vunpack.c.l.b16 %v124
    %v384 = vunpack.c.l.b16 %v125
    %v385 = vunpack.c.l.b16 %v126
    %v386 = vunpack.c.l.b16 %v127
    %v387 = vunpack.c.l.b16 %v128
    %v388 = vunpack.c.l.b16 %v129
    %v389 = vunpack.c.l.b16 %v130
    %v390 = vunpack.c.l.b16 %v131
    %v391 = vunpack.c.l.b16 %v132
    %v392 = vunpack.c.l.b16 %v133
    %v393 = vunpack.c.l.b16 %v134
    %v394 = vunpack.c.l.b16 %v135
    %v395 = vunpack.c.l.b16 %v136
    %v396 = vunpack.c.l.b16 %v137
    %v397 = vunpack.c.l.b16 %v138
    %v398 = vunpack.c.l.b16 %v139
    %v399 = vunpack.c.l.b16 %v140
    %v400 = vunpack.c.l.b16 %v141
    %v401 = vunpack.c.l.b16 %v142
    %v402 = vunpack.c.l.b16 %v143
    %v403 = vunpack.c.l.b16 %v144
    %v404 = vunpack.c.l.b16 %v145
    %v405 = vunpack.c.l.b16 %v146
    %v406 = vunpack.c.l.b16 %v147
    %v407 = vunpack.c.l.b16 %v148
    %v408 = vunpack.c.l.b16 %v149
    %v409 = vunpack.c.l.b16 %v150
    %v410 = vunpack.c.l.b16 %v151
    %v411 = vunpack.c.l.b16 %v152
    %v412 = vunpack.c.l.b16 %v153
    %v413 = vunpack.c.l.b16 %v154
    %v414 = vunpack.c.l.b16 %v155
    %v415 = vunpack.c.l.b16 %v156
    %v416 = vunpack.c.l.b16 %v157
    %v417 = vunpack.c.l.b16 %v158
    %v418 = vunpack.c.l.b16 %v159
    %v419 = vunpack.c.l.b16 %v160
    %v420 = vunpack.c.l.b16 %v161
    %v421 = vunpack.c.l.b16 %v162
    %v422 = vpack.c.b16 %v327, %v326
    %v423 = vpack.c.b16 %v329, %v328
    %v424 = vpack.c.b16 %v331, %v330
    %v425 = vpack.c.b16 %v333, %v332
    %v426 = vpack.c.b16 %v335, %v334
    %v427 = vpack.c.b16 %v337, %v336
    %v428 = vpack.c.b16 %v339, %v338
    %v429 = vpack.c.b16 %v341, %v340
    %v430 = vpack.c.b16 %v343, %v342
    %v431 = vpack.c.b16 %v345, %v344
    %v432 = vpack.c.b16 %v347, %v346
    %v433 = vpack.c.b16 %v349, %v348
    %v434 = vpack.c.b16 %v351, %v350
    %v435 = vpack.c.b16 %v353, %v352
    %v436 = vpack.c.b16 %v355, %v354
    %v437 = vpack.c.b16 %v357, %v356
    %v438 = vpack.c.b16 %v359, %v358
    %v439 = vpack.c.b16 %v361, %v360
    %v440 = vpack.c.b16 %v363, %v362
    %v441 = vpack.c.b16 %v365, %v364
    %v442 = vpack.c.b16 %v367, %v366
    %v443 = vpack.c.b16 %v369, %v368
    %v444 = vpack.c.b16 %v371, %v370
    %v445 = vpack.c.b16 %v373, %v372
    %v446 = vpack.c.b16 %v375, %v374
    %v447 = vpack.c.b16 %v377, %v376
    %v448 = vpack.c.b16 %v379, %v378
    %v449 = vpack.c.b16 %v381, %v380
    %v450 = vpack.c.b16 %v383, %v382
    %v451 = vpack.c.b16 %v385, %v384
    %v452 = vpack.c.b16 %v387, %v386
    %v453 = vpack.c.b16 %v389, %v388
    %v454 = vpack.c.b16 %v391, %v390
    %v455 = vpack.c.b16 %v393, %v392
    %v456 = vpack.c.b16 %v395, %v394
    %v457 = vpack.c.b16 %v397, %v396
    %v458 = vpack.c.b16 %v399, %v398
    %v459 = vpack.c.b16 %v401, %v400
    %v460 = vpack.c.b16 %v403, %v402
    %v461 = vpack.c.b16 %v405, %v404
    %v462 = vpack.c.b16 %v407, %v406
    %v463 = vpack.c.b16 %v409, %v408
    %v464 = vpack.c.b16 %v411, %v410
    %v465 = vpack.c.b16 %v413, %v412
    %v466 = vpack.c.b16 %v415, %v414
    %v467 = vpack.c.b16 %v417, %v416
    %v468 = vpack.c.b16 %v419, %v418
    %v469 = vpack.c.b16 %v421, %v420
    %518 = vmatprep.subr.bf16.mxu0 0
    %519 = vmatpush1.bf16.msra.mxu0 %v422
    %520 = vmatprep.subr.bf16.mxu0 0
    %521 = vmatpush1.bf16.msra.mxu0 %v423
    %522 = vmatprep.subr.bf16.mxu0 0
    %523 = vmatpush1.bf16.msra.mxu0 %v424
    %524 = vmatprep.subr.bf16.mxu0 0
    %525 = vmatpush1.bf16.msra.mxu0 %v425
    %526 = vmatprep.subr.bf16.mxu0 0
    %527 = vmatpush1.bf16.msra.mxu0 %v426
    %528 = vmatprep.subr.bf16.mxu0 0
    %529 = vmatpush1.bf16.msra.mxu0 %v427
    %530 = vmatprep.subr.bf16.mxu0 0
    %531 = vmatpush1.bf16.msra.mxu0 %v428
    %532 = vmatprep.subr.bf16.mxu0 0
    %533 = vmatpush1.bf16.msra.mxu0 %v429
    %534 = vmatprep.subr.bf16.mxu0 0
    %535 = vmatpush1.bf16.msra.mxu0 %v430
    %536 = vmatprep.subr.bf16.mxu0 0
    %537 = vmatpush1.bf16.msra.mxu0 %v431
    %538 = vmatprep.subr.bf16.mxu0 0
    %539 = vmatpush1.bf16.msra.mxu0 %v432
    %540 = vmatprep.subr.bf16.mxu0 0
    %541 = vmatpush1.bf16.msra.mxu0 %v433
    %542 = vmatprep.subr.bf16.mxu0 0
    %543 = vmatpush1.bf16.msra.mxu0 %v434
    %544 = vmatprep.subr.bf16.mxu0 0
    %545 = vmatpush1.bf16.msra.mxu0 %v435
    %546 = vmatprep.subr.bf16.mxu0 0
    %547 = vmatpush1.bf16.msra.mxu0 %v436
    %548 = vmatprep.subr.bf16.mxu0 0
    %549 = vmatpush1.bf16.msra.mxu0 %v437
    %550 = vmatprep.mubr.bf16.mxu0 %v207
    %551 = vmatmul.mubr.bf16.gmra.mrb[0].mxu0 %v206
    %v552 = vpop.f32.mrb[0].mxu0
    %v553 = vadd.f32 %v168, %v552
    %v554 = vpop.f32.mrb[0].mxu0
    %v555 = vpop.f32.mrb[0].mxu0
    %v556 = vadd.f32 %v168, %v555
    %v557 = vpop.f32.mrb[0].mxu0
    %558 = vmatprep.mubr.bf16.mxu0 %v213
    %559 = vmatmul.mubr.bf16.gmra.mrb[0].mxu0 %v212
    %v560 = vpop.f32.mrb[0].mxu0
    %v561 = vadd.f32 %v168, %v560
    %v562 = vpop.f32.mrb[0].mxu0
    %v563 = vpop.f32.mrb[0].mxu0
    %v564 = vadd.f32 %v168, %v563
    %v565 = vpop.f32.mrb[0].mxu0
    %566 = vdwg.mxu0
    %567 = vmatprep.subr.bf16.mxu0 0
    %568 = vmatpush1.bf16.msra.mxu0 %v438
    %569 = vmatprep.subr.bf16.mxu0 0
    %570 = vmatpush1.bf16.msra.mxu0 %v439
    %571 = vmatprep.subr.bf16.mxu0 0
    %572 = vmatpush1.bf16.msra.mxu0 %v440
    %573 = vmatprep.subr.bf16.mxu0 0
    %574 = vmatpush1.bf16.msra.mxu0 %v441
    %575 = vmatprep.subr.bf16.mxu0 0
    %576 = vmatpush1.bf16.msra.mxu0 %v442
    %577 = vmatprep.subr.bf16.mxu0 0
    %578 = vmatpush1.bf16.msra.mxu0 %v443
    %579 = vmatprep.subr.bf16.mxu0 0
    %580 = vmatpush1.bf16.msra.mxu0 %v444
    %581 = vmatprep.subr.bf16.mxu0 0
    %582 = vmatpush1.bf16.msra.mxu0 %v445
    %583 = vmatprep.subr.bf16.mxu0 0
    %584 = vmatpush1.bf16.msra.mxu0 %v446
    %585 = vmatprep.subr.bf16.mxu0 0
    %586 = vmatpush1.bf16.msra.mxu0 %v447
    %587 = vmatprep.subr.bf16.mxu0 0
    %588 = vmatpush1.bf16.msra.mxu0 %v448
    %589 = vmatprep.subr.bf16.mxu0 0
    %590 = vmatpush1.bf16.msra.mxu0 %v449
    %591 = vmatprep.subr.bf16.mxu0 0
    %592 = vmatpush1.bf16.msra.mxu0 %v450
    %593 = vmatprep.subr.bf16.mxu0 0
    %594 = vmatpush1.bf16.msra.mxu0 %v451
    %595 = vmatprep.subr.bf16.mxu0 0
    %596 = vmatpush1.bf16.msra.mxu0 %v452
    %597 = vmatprep.subr.bf16.mxu0 0
    %598 = vmatpush1.bf16.msra.mxu0 %v453
    %599 = vmatprep.mubr.bf16.mxu0 %v209
    %600 = vmatmul.mubr.bf16.gmra.mrb[0].mxu0 %v208
    %v601 = vpop.f32.mrb[0].mxu0
    %v602 = vadd.f32 %v553, %v601
    %v603 = vpop.f32.mrb[0].mxu0
    %v604 = vpop.f32.mrb[0].mxu0
    %v605 = vadd.f32 %v556, %v604
    %v606 = vpop.f32.mrb[0].mxu0
    %607 = vmatprep.mubr.bf16.mxu0 %v215
    %608 = vmatmul.mubr.bf16.gmra.mrb[0].mxu0 %v214
    %v609 = vpop.f32.mrb[0].mxu0
    %v610 = vadd.f32 %v561, %v609
    %v611 = vpop.f32.mrb[0].mxu0
    %v612 = vpop.f32.mrb[0].mxu0
    %v613 = vadd.f32 %v564, %v612
    %v614 = vpop.f32.mrb[0].mxu0
    %615 = vdwg.mxu0
    %616 = vmatprep.subr.bf16.mxu0 0
    %617 = vmatpush1.bf16.msra.mxu0 %v454
    %618 = vmatprep.subr.bf16.mxu0 0
    %619 = vmatpush1.bf16.msra.mxu0 %v455
    %620 = vmatprep.subr.bf16.mxu0 0
    %621 = vmatpush1.bf16.msra.mxu0 %v456
    %622 = vmatprep.subr.bf16.mxu0 0
    %623 = vmatpush1.bf16.msra.mxu0 %v457
    %624 = vmatprep.subr.bf16.mxu0 0
    %625 = vmatpush1.bf16.msra.mxu0 %v458
    %626 = vmatprep.subr.bf16.mxu0 0
    %627 = vmatpush1.bf16.msra.mxu0 %v459
    %628 = vmatprep.subr.bf16.mxu0 0
    %629 = vmatpush1.bf16.msra.mxu0 %v460
    %630 = vmatprep.subr.bf16.mxu0 0
    %631 = vmatpush1.bf16.msra.mxu0 %v461
    %632 = vmatprep.subr.bf16.mxu0 0
    %633 = vmatpush1.bf16.msra.mxu0 %v462
    %634 = vmatprep.subr.bf16.mxu0 0
    %635 = vmatpush1.bf16.msra.mxu0 %v463
    %636 = vmatprep.subr.bf16.mxu0 0
    %637 = vmatpush1.bf16.msra.mxu0 %v464
    %638 = vmatprep.subr.bf16.mxu0 0
    %639 = vmatpush1.bf16.msra.mxu0 %v465
    %640 = vmatprep.subr.bf16.mxu0 0
    %641 = vmatpush1.bf16.msra.mxu0 %v466
    %642 = vmatprep.subr.bf16.mxu0 0
    %643 = vmatpush1.bf16.msra.mxu0 %v467
    %644 = vmatprep.subr.bf16.mxu0 0
    %645 = vmatpush1.bf16.msra.mxu0 %v468
    %646 = vmatprep.subr.bf16.mxu0 0
    %647 = vmatpush1.bf16.msra.mxu0 %v469
    %648 = vmatprep.mubr.bf16.mxu0 %v211
    %649 = vmatmul.mubr.bf16.gmra.mrb[0].mxu0 %v210
    %v650 = vpop.f32.mrb[0].mxu0
    %v651 = vadd.f32 %v602, %v650
    %v652 = vpop.f32.mrb[0].mxu0
    %v653 = vpop.f32.mrb[0].mxu0
    %v654 = vadd.f32 %v605, %v653
    %v655 = vpop.f32.mrb[0].mxu0
    %656 = vmatprep.mubr.bf16.mxu0 %v217
    %657 = vmatmul.mubr.bf16.gmra.mrb[0].mxu0 %v216
    %v658 = vpop.f32.mrb[0].mxu0
    %v659 = vadd.f32 %v610, %v658
    %v660 = vpop.f32.mrb[0].mxu0
    %v661 = vpop.f32.mrb[0].mxu0
    %v662 = vadd.f32 %v613, %v661
    %v663 = vpop.f32.mrb[0].mxu0
    %664 = vdwg.mxu0
    %v665 = vpack.c.bf16 %v654, %v651
    %v666 = vpack.c.bf16 %v662, %v659
    %v669 = vunpack.c.l.b16 %v665
    %v670 = vunpack.c.h.b16 %v665
    %v671 = vunpack.c.l.b16 %v666
    %v672 = vunpack.c.h.b16 %v666
    %v673 = vpack.c.b16 %v669, %v669
    %v674 = vpack.c.b16 %v670, %v670
    %v675 = vpack.c.b16 %v671, %v671
    %v676 = vpack.c.b16 %v672, %v672
    %vm681 = vcmask 519168
    %682 = vst.msk [vmem:[#allocation8] sm:$0xf] %vm681, %v673
    %683 = vst.msk [vmem:[#allocation8 + $0x4] sm:$0xf] %vm681, %v674
    %684 = vst.msk [vmem:[#allocation8 + $0x8] sm:$0xf] %vm681, %v675
    %685 = vst.msk [vmem:[#allocation8 + $0xc] sm:$0xf] %vm681, %v676
    // Predicated region
    $region26: #{matmul.1} parent=1 // pred_check
      _
    $region27: #{matmul.1} parent=1 // pred_check_branch
      %687 = sbr.rel (0) target = $region29
    $region28: #{matmul.1} parent=1 // pred_region
      %s689 = ssub.s32 256, 256
      %690 = vsyncadd [#allocation4], %s689
      %s691 = sshll.u32 [#allocation8], 4
      %s692 = int_to_ptr.vmem [resolvable:$true] %s691
      %697 = dma.vmem_to_hbm [thread:$0]  %s692, 256, %s3, [#allocation4], 64, 64, 4
    $region29: #{matmul.1} parent=1 // pred_fallthru
      _
    // Predicated region
    $region30: #{matmul.1} parent=1 // pred_check
      _
    $region31: #{matmul.1} parent=1 // pred_check_branch
      %699 = sbr.rel (0) target = $region33
    $region32: #{matmul.1} parent=1 // pred_region
      %700 = dma.done [#allocation4], 256
    $region33: #{matmul.1} parent=1 // pred_fallthru
      _
    %701 = vsyncpa [#allocation3], 1
    %702 = vsyncpa [#allocation6], 1
    %703 = vsyncpa [#allocation4], 1

</llo_original>
